<compile_context>
chip_gen: v6e
topology: v6e:2x2x1
jax: 0.10.0
libtpu: 0.0.40
codegen_flags: <defaults>
</compile_context>

<pallas_src>
import functools

import jax
import jax.numpy as jnp
from jax.experimental import pallas as pl
from jax.experimental.pallas import tpu as pltpu

INPUT_SIZE = 100
HIDDEN_SIZE = 256
OUTPUT_SIZE = 88
OUTPUT_PAD = 128          # lane-dense output width (unmasked vst)

MAX_BLOCK_M = 4096        # VMEM-safety cap on the row tile


def _round_up(x, m):
    return (x + m - 1) // m * m


# --------------------------------------------------------------------------- #
# Kernel
# --------------------------------------------------------------------------- #
def _generator_kernel(x_ref, w1_ref, b1_ref, w2_ref, b2_ref, w3_ref, b3_ref, o_ref):
    # x:  (bm, 100) float32 (cast to compute dtype in-kernel)
    # w1: (100, 256)  w2: (256, 256)  w3: (256, 128)   in compute dtype
    # b1/b2: (1, 256)  b3: (1, 128)   float32
    # Accumulation + bias + ReLU + tanh stay in float32 (VPU/EUP slots have
    # slack under the MXU+DMA bound); only the MXU operands are low precision.
    cd = w1_ref.dtype
    x = x_ref[...].astype(cd)

    h1 = jnp.dot(x, w1_ref[...], preferred_element_type=jnp.float32) + b1_ref[...]
    h1 = jnp.maximum(h1, 0.0).astype(cd)                              # ReLU

    h2 = jnp.dot(h1, w2_ref[...], preferred_element_type=jnp.float32) + b2_ref[...]
    h2 = jnp.maximum(h2, 0.0).astype(cd)                              # ReLU

    y = jnp.dot(h2, w3_ref[...], preferred_element_type=jnp.float32) + b3_ref[...]
    o_ref[...] = jnp.tanh(y).astype(o_ref.dtype)                      # Tanh


# --------------------------------------------------------------------------- #
# Tile-size selection
# --------------------------------------------------------------------------- #
def _choose_block_m(batch, block_m):
    """Row-tile size.

    * Big tiles amortize the ~0.35 us per-grid-step overhead.
    * For large batches, target >= 8 grid steps so the BlockSpec pipeline can
      overlap x-load / out-store with MXU work and v7x's two TensorCores each
      get >= 4 steps under dimension_semantics=("parallel",).
    * Multiples of 256 keep every MXU M-pass full and every bf16 tile native.
    * Hard cap keeps live VMEM (h1/h2 intermediates ~6-8 KiB/row) well under
      the scoped limit we request on every generation (v5e/v6e/v7x).
    """
    batch8 = _round_up(batch, 8)
    if batch8 <= 512:
        return batch8                                   # single small tile
    bm = _round_up(min(block_m, MAX_BLOCK_M), 256)
    target = max(256, _round_up(pl.cdiv(batch, 8), 256))  # ~8 steps
    return min(bm, target)


# --------------------------------------------------------------------------- #
# Parameter preparation (one-time, outside the jitted forward)
# --------------------------------------------------------------------------- #
def prepare_params(params, compute_dtype=jnp.bfloat16):
    """Pad w3/b3 to 128 output lanes and cast MXU operands to compute_dtype.

    Run once; the result is what `generator_forward` consumes every call.
    """
    w1, b1, w2, b2, w3, b3 = params
    w3_p = jnp.pad(w3, ((0, 0), (0, OUTPUT_PAD - OUTPUT_SIZE)))
    b3_p = jnp.pad(b3, ((0, 0), (0, OUTPUT_PAD - OUTPUT_SIZE)))
    return (
        w1.astype(compute_dtype),
        b1.astype(jnp.float32),
        w2.astype(compute_dtype),
        b2.astype(jnp.float32),
        w3_p.astype(compute_dtype),
        b3_p.astype(jnp.float32),
    )


# --------------------------------------------------------------------------- #
# Forward
# --------------------------------------------------------------------------- #
@functools.partial(jax.jit, static_argnames=("block_m", "padded_output"))
def generator_forward(x, prepared_params, block_m=2048, padded_output=False):
    """x: (batch, 100) float32 -> (batch, 88) float32 (or (batch, 128) if padded_output)."""
    w1, b1, w2, b2, w3, b3 = prepared_params
    batch = x.shape[0]

    bm = _choose_block_m(batch, block_m)
    grid = (pl.cdiv(batch, bm),)          # partial last block handled by masked writes

    # Scoped-VMEM request: per-row live bytes (x/out double-buffers + f32/bf16
    # h1,h2) ~6-8 KiB, plus ~1 MiB of resident weights.  Cap at 48 MiB so it is
    # valid on v7x (64 MiB/TC) and plentiful on v5e/v6e (128 MiB physical).
    vmem_limit = int(min(48 * 1024 * 1024,
                         max(16 * 1024 * 1024, bm * 8 * 1024 + (4 << 20))))

    # Advisory cost estimate for XLA's scheduler.
    w_bytes = sum(int(a.size) * a.dtype.itemsize for a in prepared_params)
    cost = pl.CostEstimate(
        flops=2 * batch * (INPUT_SIZE * HIDDEN_SIZE
                           + HIDDEN_SIZE * HIDDEN_SIZE
                           + HIDDEN_SIZE * OUTPUT_PAD),
        transcendentals=batch * OUTPUT_PAD,
        bytes_accessed=int(x.size) * x.dtype.itemsize
                       + batch * OUTPUT_PAD * 4
                       + w_bytes,
    )

    # Weights / biases fully VMEM-resident every step (constant block index,
    # < 0.5 MiB total -> only DMA'd once).
    full = lambda shape: pl.BlockSpec(shape, lambda i: (0, 0))

    out_p = pl.pallas_call(
        _generator_kernel,
        out_shape=jax.ShapeDtypeStruct((batch, OUTPUT_PAD), jnp.float32),
        grid_spec=pltpu.PrefetchScalarGridSpec(
            num_scalar_prefetch=0,
            grid=grid,
            in_specs=[
                pl.BlockSpec((bm, INPUT_SIZE), lambda i: (i, 0)),   # x tile (raw f32)
                full((INPUT_SIZE, HIDDEN_SIZE)),                    # w1 (100, 256)
                full((1, HIDDEN_SIZE)),                             # b1
                full((HIDDEN_SIZE, HIDDEN_SIZE)),                   # w2
                full((1, HIDDEN_SIZE)),                             # b2
                full((HIDDEN_SIZE, OUTPUT_PAD)),                    # w3 (padded cols)
                full((1, OUTPUT_PAD)),                              # b3 (padded cols)
            ],
            out_specs=pl.BlockSpec((bm, OUTPUT_PAD), lambda i: (i, 0)),
        ),
        compiler_params=pltpu.CompilerParams(
            dimension_semantics=("parallel",),
            vmem_limit_bytes=vmem_limit,
        ),
        cost_estimate=cost,
    )(x, w1, b1, w2, b2, w3, b3)

    if padded_output:
        return out_p                     # lane-dense (batch, 128); cols 88..127 are tanh(b3_pad)=0-ish pads
    return out_p[:, :OUTPUT_SIZE]        # semantic (batch, 88) output


# --------------------------------------------------------------------------- #
# Init + pure-JAX reference
# --------------------------------------------------------------------------- #
def init_params(key):
    """PyTorch nn.Linear-style init (U(+/- 1/sqrt(fan_in))); weights stored
    already transposed to (in_features, out_features)."""
    def linear(key, fan_in, fan_out):
        kw, kb = jax.random.split(key)
        bound = 1.0 / jnp.sqrt(jnp.float32(fan_in))
        w = jax.random.uniform(kw, (fan_in, fan_out), jnp.float32, -bound, bound)
        b = jax.random.uniform(kb, (1, fan_out), jnp.float32, -bound, bound)
        return w, b

    k1, k2, k3 = jax.random.split(key, 3)
    w1, b1 = linear(k1, INPUT_SIZE, HIDDEN_SIZE)
    w2, b2 = linear(k2, HIDDEN_SIZE, HIDDEN_SIZE)
    w3, b3 = linear(k3, HIDDEN_SIZE, OUTPUT_SIZE)
    return (w1, b1, w2, b2, w3, b3)


def reference_forward(x, params):
    w1, b1, w2, b2, w3, b3 = params
    h1 = jnp.maximum(x @ w1 + b1, 0.0)
    h2 = jnp.maximum(h1 @ w2 + b2, 0.0)
    return jnp.tanh(h2 @ w3 + b3)


if __name__ == "__main__":
    key = jax.random.PRNGKey(0)
    k_params, k_x1, k_x2, k_x3 = jax.random.split(key, 4)
    params = init_params(k_params)

    # Check 1: small batch, full-precision MXU path -> tight tolerance.
    prep_f32 = prepare_params(params, jnp.float32)
    x1 = jax.random.normal(k_x1, (16, INPUT_SIZE), jnp.float32)
    out1 = jax.block_until_ready(generator_forward(x1, prep_f32))
    ref1 = reference_forward(x1, params)
    assert out1.shape == (16, OUTPUT_SIZE)
    assert jnp.allclose(out1, ref1, atol=1e-5, rtol=1e-5), "f32 Pallas output mismatch"

    # Check 2: non-multiple-of-8 batch (masked last rows), bf16 MXU operands.
    prep_bf16 = prepare_params(params, jnp.bfloat16)
    x2 = jax.random.normal(k_x2, (10, INPUT_SIZE), jnp.float32)
    out2 = jax.block_until_ready(generator_forward(x2, prep_bf16))
    ref2 = reference_forward(x2, params)
    assert out2.shape == (10, OUTPUT_SIZE)
    assert jnp.allclose(out2, ref2, atol=2e-2, rtol=2e-2), "bf16 Pallas output mismatch"

    # Check 3: multi-step grid with a partial last block (700 = 2*256 + 188), bf16.
    x3 = jax.random.normal(k_x3, (700, INPUT_SIZE), jnp.float32)
    out3 = jax.block_until_ready(generator_forward(x3, prep_bf16))
    ref3 = reference_forward(x3, params)
    assert out3.shape == (700, OUTPUT_SIZE)
    assert jnp.allclose(out3, ref3, atol=2e-2, rtol=2e-2), "multi-step Pallas output mismatch"

    print("KERNEL_OK")
</pallas_src>

<mosaic_0001>
module attributes {stable_mosaic.version = 11 : i64} {
  func.func @_generator_kernel(%arg0: i32, %arg1: memref<16x100xf32, #tpu.memory_space<vmem>>, %arg2: memref<100x256xf32, #tpu.memory_space<vmem>>, %arg3: memref<1x256xf32, #tpu.memory_space<vmem>>, %arg4: memref<256x256xf32, #tpu.memory_space<vmem>>, %arg5: memref<1x256xf32, #tpu.memory_space<vmem>>, %arg6: memref<256x128xf32, #tpu.memory_space<vmem>>, %arg7: memref<1x128xf32, #tpu.memory_space<vmem>>, %arg8: memref<16x128xf32, #tpu.memory_space<vmem>>) attributes {dimension_semantics = [#tpu.dimension_semantics<parallel>], iteration_bounds = array<i64: 1>, scalar_prefetch = 0 : i64, scratch_operands = 0 : i64, tpu.core_type = #tpu.core_type<tc>, window_params = [{transform_indices = @transform_0, window_bounds = array<i64: 16, 100>}, {pipeline_mode = #tpu.pipeline_mode<synchronous>, transform_indices = @transform_1, window_bounds = array<i64: 100, 256>}, {pipeline_mode = #tpu.pipeline_mode<synchronous>, transform_indices = @transform_2, window_bounds = array<i64: 1, 256>}, {pipeline_mode = #tpu.pipeline_mode<synchronous>, transform_indices = @transform_3, window_bounds = array<i64: 256, 256>}, {pipeline_mode = #tpu.pipeline_mode<synchronous>, transform_indices = @transform_4, window_bounds = array<i64: 1, 256>}, {pipeline_mode = #tpu.pipeline_mode<synchronous>, transform_indices = @transform_5, window_bounds = array<i64: 256, 128>}, {pipeline_mode = #tpu.pipeline_mode<synchronous>, transform_indices = @transform_6, window_bounds = array<i64: 1, 128>}, {transform_indices = @transform_7, window_bounds = array<i64: 16, 128>}]} {
    %c0 = arith.constant 0 : index
    %c0_0 = arith.constant 0 : index
    %0 = vector.load %arg1[%c0, %c0_0] : memref<16x100xf32, #tpu.memory_space<vmem>>, vector<16x100xf32>
    %c0_1 = arith.constant 0 : index
    %c0_2 = arith.constant 0 : index
    %1 = vector.load %arg2[%c0_1, %c0_2] : memref<100x256xf32, #tpu.memory_space<vmem>>, vector<100x256xf32>
    %cst = arith.constant dense<0.000000e+00> : vector<16x256xf32>
    %2 = tpu.matmul %0, %1, %cst {dimension_numbers = #tpu.dot_dimension_numbers<[1], [0], [0], [1], [0, 0, 1, 1], [], []>} : vector<16x100xf32>, vector<100x256xf32>, vector<16x256xf32> -> vector<16x256xf32>
    %c0_3 = arith.constant 0 : index
    %c0_4 = arith.constant 0 : index
    %3 = vector.load %arg3[%c0_3, %c0_4] : memref<1x256xf32, #tpu.memory_space<vmem>>, vector<1x256xf32>
    %4 = vector.broadcast %3 : vector<1x256xf32> to vector<16x256xf32>
    %5 = arith.addf %2, %4 : vector<16x256xf32>
    %cst_5 = arith.constant 0.000000e+00 : f32
    %6 = vector.broadcast %cst_5 : f32 to vector<16x256xf32>
    %7 = arith.maximumf %5, %6 : vector<16x256xf32>
    %c0_6 = arith.constant 0 : index
    %c0_7 = arith.constant 0 : index
    %8 = vector.load %arg4[%c0_6, %c0_7] : memref<256x256xf32, #tpu.memory_space<vmem>>, vector<256x256xf32>
    %cst_8 = arith.constant dense<0.000000e+00> : vector<16x256xf32>
    %9 = tpu.matmul %7, %8, %cst_8 {dimension_numbers = #tpu.dot_dimension_numbers<[1], [0], [0], [1], [0, 0, 1, 1], [], []>} : vector<16x256xf32>, vector<256x256xf32>, vector<16x256xf32> -> vector<16x256xf32>
    %c0_9 = arith.constant 0 : index
    %c0_10 = arith.constant 0 : index
    %10 = vector.load %arg5[%c0_9, %c0_10] : memref<1x256xf32, #tpu.memory_space<vmem>>, vector<1x256xf32>
    %11 = vector.broadcast %10 : vector<1x256xf32> to vector<16x256xf32>
    %12 = arith.addf %9, %11 : vector<16x256xf32>
    %cst_11 = arith.constant 0.000000e+00 : f32
    %13 = vector.broadcast %cst_11 : f32 to vector<16x256xf32>
    %14 = arith.maximumf %12, %13 : vector<16x256xf32>
    %c0_12 = arith.constant 0 : index
    %c0_13 = arith.constant 0 : index
    %15 = vector.load %arg6[%c0_12, %c0_13] : memref<256x128xf32, #tpu.memory_space<vmem>>, vector<256x128xf32>
    %cst_14 = arith.constant dense<0.000000e+00> : vector<16x128xf32>
    %16 = tpu.matmul %14, %15, %cst_14 {dimension_numbers = #tpu.dot_dimension_numbers<[1], [0], [0], [1], [0, 0, 1, 1], [], []>} : vector<16x256xf32>, vector<256x128xf32>, vector<16x128xf32> -> vector<16x128xf32>
    %c0_15 = arith.constant 0 : index
    %c0_16 = arith.constant 0 : index
    %17 = vector.load %arg7[%c0_15, %c0_16] : memref<1x128xf32, #tpu.memory_space<vmem>>, vector<1x128xf32>
    %18 = vector.broadcast %17 : vector<1x128xf32> to vector<16x128xf32>
    %19 = arith.addf %16, %18 : vector<16x128xf32>
    %20 = math.tanh %19 : vector<16x128xf32>
    %c0_17 = arith.constant 0 : index
    %c0_18 = arith.constant 0 : index
    %21 = vector.load %arg8[%c0_17, %c0_18] : memref<16x128xf32, #tpu.memory_space<vmem>>, vector<16x128xf32>
    tpu.vector_store %arg8[%c0_17, %c0_18], %20 {strides = array<i32>} : memref<16x128xf32, #tpu.memory_space<vmem>>, vector<16x128xf32>,
    return
  }
  func.func @transform_0(%arg0: i32) -> (i32, i32) {
    %c0_i32 = arith.constant 0 : i32
    %c0_i32_0 = arith.constant 0 : i32
    return %arg0, %c0_i32 : i32, i32
  }
  func.func @transform_1(%arg0: i32) -> (i32, i32) {
    %c0_i32 = arith.constant 0 : i32
    %c0_i32_0 = arith.constant 0 : i32
    %c0_i32_1 = arith.constant 0 : i32
    return %c0_i32, %c0_i32_0 : i32, i32
  }
  func.func @transform_2(%arg0: i32) -> (i32, i32) {
    %c0_i32 = arith.constant 0 : i32
    %c0_i32_0 = arith.constant 0 : i32
    %c0_i32_1 = arith.constant 0 : i32
    return %c0_i32, %c0_i32_0 : i32, i32
  }
  func.func @transform_3(%arg0: i32) -> (i32, i32) {
    %c0_i32 = arith.constant 0 : i32
    %c0_i32_0 = arith.constant 0 : i32
    %c0_i32_1 = arith.constant 0 : i32
    return %c0_i32, %c0_i32_0 : i32, i32
  }
  func.func @transform_4(%arg0: i32) -> (i32, i32) {
    %c0_i32 = arith.constant 0 : i32
    %c0_i32_0 = arith.constant 0 : i32
    %c0_i32_1 = arith.constant 0 : i32
    return %c0_i32, %c0_i32_0 : i32, i32
  }
  func.func @transform_5(%arg0: i32) -> (i32, i32) {
    %c0_i32 = arith.constant 0 : i32
    %c0_i32_0 = arith.constant 0 : i32
    %c0_i32_1 = arith.constant 0 : i32
    return %c0_i32, %c0_i32_0 : i32, i32
  }
  func.func @transform_6(%arg0: i32) -> (i32, i32) {
    %c0_i32 = arith.constant 0 : i32
    %c0_i32_0 = arith.constant 0 : i32
    %c0_i32_1 = arith.constant 0 : i32
    return %c0_i32, %c0_i32_0 : i32, i32
  }
  func.func @transform_7(%arg0: i32) -> (i32, i32) {
    %c0_i32 = arith.constant 0 : i32
    %c0_i32_0 = arith.constant 0 : i32
    return %arg0, %c0_i32 : i32, i32
  }
}

</mosaic_0001>

<llo_original>
// kernel: generator_forward.1
$region0: #{generator_forward.1}
  #allocation0 [shape = 'u32[]', space=smem, size = 0x4, offset = 0x4, fixed_abs, tag = 'smem constant byte address 0x4 - core index']
  #allocation1 [shape = 'u32[144,128]{1,0:T(1,128)}', space=vmem, size = 0x12000, scoped, tag = 'internal scratch']
  %s0 = inlined_call_operand.hbm [shape: f32[16,100], index: 0, kind: input, shape index: {}]
  %s1 = inlined_call_operand.hbm [shape: f32[100,256], index: 1, kind: input, shape index: {}]
  %s2 = inlined_call_operand.vmem [shape: f32[1,256], index: 2, kind: input, shape index: {}]
  %s3 = inlined_call_operand.hbm [shape: f32[256,256], index: 3, kind: input, shape index: {}]
  %s4 = inlined_call_operand.vmem [shape: f32[1,256], index: 4, kind: input, shape index: {}]
  %s5 = inlined_call_operand.hbm [shape: f32[256,128], index: 5, kind: input, shape index: {}]
  %s6 = inlined_call_operand.vmem [shape: f32[1,128], index: 6, kind: input, shape index: {}]
  %s7 = inlined_call_operand.hbm [shape: f32[16,128], index: 7, kind: output, shape index: {}]
  %s8 = sld [smem:[#allocation0]]
  $region54: #{generator_forward.1} parent=0
    _
  %s10 = ssub.s32 1, %s8
  %s11 = scalar_select 0, %s10, %s8
  $region1: #{generator_forward.1} parent=0
    #allocation2 [shape = 'u8[8192]{0}', space=vmem, size = 0x2000, scoped, tag = 'input window, operand 0, single buffered']
    #allocation3 [shape = 's32[1]{0}', space=sflag, size = 0x4, scoped, tag = 'scoped memory for generator_forward.1']
    #allocation4 [shape = 's32[1]{0}', space=sflag, size = 0x4, scoped, tag = 'scoped memory for generator_forward.1']
    #allocation5 [shape = 'u8[106496]{0}', space=vmem, size = 0x1a000, scoped, tag = 'input window, operand 1, single buffered']
    #allocation6 [shape = 's32[1]{0}', space=sflag, size = 0x4, scoped, tag = 'scoped memory for generator_forward.1']
    #allocation7 [shape = 'u8[262144]{0}', space=vmem, size = 0x40000, scoped, tag = 'input window, operand 3, single buffered']
    #allocation8 [shape = 'u8[131072]{0}', space=vmem, size = 0x20000, scoped, tag = 'input window, operand 5, single buffered']
    #allocation9 [shape = 's32[1]{0}', space=sflag, size = 0x4, scoped, tag = 'scoped memory for generator_forward.1']
    #allocation10 [shape = 'u8[8192]{0}', space=vmem, size = 0x2000, scoped, tag = 'output window, operand 0, single buffered']
    %12 = vsyncpa [#allocation3], 0
    %13 = vsyncpa [#allocation6], 0
    %14 = vsyncpa [#allocation9], 0
    %15 = vsyncpa [#allocation4], 0
    // Predicated region
    $region2: #{generator_forward.1} parent=1 // pred_check
      _
    $region3: #{generator_forward.1} parent=1 // pred_check_branch
      %17 = sbr.rel (0) target = $region5
    $region4: #{generator_forward.1} parent=1 // pred_region
      %s19 = ssub.s32 256, 256
      %20 = vsyncadd [#allocation3], %s19
      %s21 = sshll.u32 [#allocation2], 4
      %s22 = int_to_ptr.vmem [resolvable:$true] %s21
      %27 = dma.hbm_to_vmem [thread:$0]  %s0, 256, %s22, [#allocation3], 128, 128, 8
    $region5: #{generator_forward.1} parent=1 // pred_fallthru
      _
    // Predicated region
    $region6: #{generator_forward.1} parent=1 // pred_check
      _
    $region7: #{generator_forward.1} parent=1 // pred_check_branch
      %29 = sbr.rel (0) target = $region9
    $region8: #{generator_forward.1} parent=1 // pred_region
      %s31 = ssub.s32 3328, 3328
      %32 = vsyncadd [#allocation6], %s31
      %s33 = sshll.u32 [#allocation5], 4
      %s34 = int_to_ptr.vmem [resolvable:$true] %s33
      %39 = dma.hbm_to_vmem [thread:$0]  %s1, 3328, %s34, [#allocation6], 256, 256, 16
    $region9: #{generator_forward.1} parent=1 // pred_fallthru
      _
    // Predicated region
    $region10: #{generator_forward.1} parent=1 // pred_check
      _
    $region11: #{generator_forward.1} parent=1 // pred_check_branch
      %41 = sbr.rel (0) target = $region13
    $region12: #{generator_forward.1} parent=1 // pred_region
      _
    $region13: #{generator_forward.1} parent=1 // pred_fallthru
      _
    // Predicated region
    $region14: #{generator_forward.1} parent=1 // pred_check
      _
    $region15: #{generator_forward.1} parent=1 // pred_check_branch
      %43 = sbr.rel (0) target = $region17
    $region16: #{generator_forward.1} parent=1 // pred_region
      %s45 = ssub.s32 8192, 8192
      %46 = vsyncadd [#allocation6], %s45
      %s47 = sshll.u32 [#allocation7], 4
      %s48 = int_to_ptr.vmem [resolvable:$true] %s47
      %53 = dma.hbm_to_vmem [thread:$0]  %s3, 8192, %s48, [#allocation6], 256, 256, 16
    $region17: #{generator_forward.1} parent=1 // pred_fallthru
      _
    // Predicated region
    $region18: #{generator_forward.1} parent=1 // pred_check
      _
    $region19: #{generator_forward.1} parent=1 // pred_check_branch
      %55 = sbr.rel (0) target = $region21
    $region20: #{generator_forward.1} parent=1 // pred_region
      _
    $region21: #{generator_forward.1} parent=1 // pred_fallthru
      _
    // Predicated region
    $region22: #{generator_forward.1} parent=1 // pred_check
      _
    $region23: #{generator_forward.1} parent=1 // pred_check_branch
      %57 = sbr.rel (0) target = $region25
    $region24: #{generator_forward.1} parent=1 // pred_region
      %s59 = ssub.s32 4096, 4096
      %60 = vsyncadd [#allocation9], %s59
      %s61 = sshll.u32 [#allocation8], 4
      %s62 = int_to_ptr.vmem [resolvable:$true] %s61
      %67 = dma.hbm_to_vmem [thread:$0]  %s5, 4096, %s62, [#allocation9], 128, 128, 8
    $region25: #{generator_forward.1} parent=1 // pred_fallthru
      _
    // Predicated region
    $region26: #{generator_forward.1} parent=1 // pred_check
      _
    $region27: #{generator_forward.1} parent=1 // pred_check_branch
      %69 = sbr.rel (0) target = $region29
    $region28: #{generator_forward.1} parent=1 // pred_region
      _
    $region29: #{generator_forward.1} parent=1 // pred_fallthru
      _
    // Predicated region
    $region30: #{generator_forward.1} parent=1 // pred_check
      _
    $region31: #{generator_forward.1} parent=1 // pred_check_branch
      %71 = sbr.rel (0) target = $region33
    $region32: #{generator_forward.1} parent=1 // pred_region
      %72 = dma.done [#allocation3], 256
    $region33: #{generator_forward.1} parent=1 // pred_fallthru
      _
    // Predicated region
    $region34: #{generator_forward.1} parent=1 // pred_check
      _
    $region35: #{generator_forward.1} parent=1 // pred_check_branch
      %74 = sbr.rel (0) target = $region37
    $region36: #{generator_forward.1} parent=1 // pred_region
      %75 = dma.done [#allocation6], 3328
    $region37: #{generator_forward.1} parent=1 // pred_fallthru
      _
    // Predicated region
    $region38: #{generator_forward.1} parent=1 // pred_check
      _
    $region39: #{generator_forward.1} parent=1 // pred_check_branch
      %77 = sbr.rel (0) target = $region41
    $region40: #{generator_forward.1} parent=1 // pred_region
      %78 = dma.done [#allocation6], 8192
    $region41: #{generator_forward.1} parent=1 // pred_fallthru
      _
    // Predicated region
    $region42: #{generator_forward.1} parent=1 // pred_check
      _
    $region43: #{generator_forward.1} parent=1 // pred_check_branch
      %80 = sbr.rel (0) target = $region45
    $region44: #{generator_forward.1} parent=1 // pred_region
      %81 = dma.done [#allocation9], 4096
    $region45: #{generator_forward.1} parent=1 // pred_fallthru
      _
    %v82 = vld [vmem:[#allocation2] sm:$0xff]
    %v83 = vld [vmem:[#allocation2 + $0x8] sm:$0xff]
    %v84 = vld [vmem:[#allocation5] sm:$0xff]
    %v85 = vld [vmem:[#allocation5 + $0x8] sm:$0xff]
    %v86 = vld [vmem:[#allocation5 + $0x10] sm:$0xff]
    %v87 = vld [vmem:[#allocation5 + $0x18] sm:$0xff]
    %v88 = vld [vmem:[#allocation5 + $0x20] sm:$0xff]
    %v89 = vld [vmem:[#allocation5 + $0x28] sm:$0xff]
    %v90 = vld [vmem:[#allocation5 + $0x30] sm:$0xff]
    %v91 = vld [vmem:[#allocation5 + $0x38] sm:$0xff]
    %v92 = vld [vmem:[#allocation5 + $0x40] sm:$0xff]
    %v93 = vld [vmem:[#allocation5 + $0x48] sm:$0xff]
    %v94 = vld [vmem:[#allocation5 + $0x50] sm:$0xff]
    %v95 = vld [vmem:[#allocation5 + $0x58] sm:$0xff]
    %v96 = vld [vmem:[#allocation5 + $0x60] sm:$0xff]
    %v97 = vld [vmem:[#allocation5 + $0x68] sm:$0xff]
    %v98 = vld [vmem:[#allocation5 + $0x70] sm:$0xff]
    %v99 = vld [vmem:[#allocation5 + $0x78] sm:$0xff]
    %v100 = vld [vmem:[#allocation5 + $0x80] sm:$0xff]
    %v101 = vld [vmem:[#allocation5 + $0x88] sm:$0xff]
    %v102 = vld [vmem:[#allocation5 + $0x90] sm:$0xff]
    %v103 = vld [vmem:[#allocation5 + $0x98] sm:$0xff]
    %v104 = vld [vmem:[#allocation5 + $0xa0] sm:$0xff]
    %v105 = vld [vmem:[#allocation5 + $0xa8] sm:$0xff]
    %v106 = vld [vmem:[#allocation5 + $0xb0] sm:$0xff]
    %v107 = vld [vmem:[#allocation5 + $0xb8] sm:$0xff]
    %v108 = vld [vmem:[#allocation5 + $0xc0] sm:$0xf]
    %v109 = vld [vmem:[#allocation5 + $0xc8] sm:$0xf]
    %v110 = vld [vmem:[%s2] sm:$0x3]
    %v112 = vlaneseq
    %v113 = vshrl.u32 %v112, 7
    %v114 = vsub.s32 0, %v113
    %v115 = vrot.slane %v110, %v114
    %v116 = vlaneseq
    %v117 = vshrl.u32 %v116, 7
    %v118 = vsub.s32 1, %v117
    %v119 = vrot.slane %v110, %v118
    %vm122 = vcmask 818176
    %v124 = vsel %vm122, %v82, 0
    %v127 = vsel %vm122, %v83, 0
    %vm129 = vcmask 1043456
    %v131 = vsel %vm129, %v108, 0
    %v134 = vsel %vm129, %v109, 0
    %136 = vmatprep.subr.mxu0 0.0
    %137 = vmatpush1.msra.mxu0 0.0
    %138 = vmatprep.subr.mxu0 0.0
    %139 = vmatpush1.msra.mxu0 0.0
    %140 = vmatprep.subr.mxu0 0.0
    %141 = vmatpush1.msra.mxu0 0.0
    %142 = vmatprep.subr.mxu0 %v134
    %143 = vmatpush1.msra.mxu0 %v131
    %144 = vmatprep.subr.mxu0 %v107
    %145 = vmatpush1.msra.mxu0 %v106
    %146 = vmatprep.subr.mxu0 %v105
    %147 = vmatpush1.msra.mxu0 %v104
    %148 = vmatprep.subr.mxu0 %v103
    %149 = vmatpush1.msra.mxu0 %v102
    %150 = vmatprep.subr.mxu0 %v101
    %151 = vmatpush1.msra.mxu0 %v100
    %152 = vmatprep.subr.mxu0 %v99
    %153 = vmatpush1.msra.mxu0 %v98
    %154 = vmatprep.subr.mxu0 %v97
    %155 = vmatpush1.msra.mxu0 %v96
    %156 = vmatprep.subr.mxu0 %v95
    %157 = vmatpush1.msra.mxu0 %v94
    %158 = vmatprep.subr.mxu0 %v93
    %159 = vmatpush1.msra.mxu0 %v92
    %160 = vmatprep.subr.mxu0 %v91
    %161 = vmatpush1.msra.mxu0 %v90
    %162 = vmatprep.subr.mxu0 %v89
    %163 = vmatpush1.msra.mxu0 %v88
    %164 = vmatprep.subr.mxu0 %v87
    %165 = vmatpush1.msra.mxu0 %v86
    %166 = vmatprep.subr.mxu0 %v85
    %167 = vmatpush1.msra.mxu0 %v84
    %168 = vmatprep.subr.mxu0 0.0
    %169 = vmatpush2.msra.mxu0 0.0
    %170 = vmatprep.subr.mxu0 0.0
    %171 = vmatpush2.msra.mxu0 0.0
    %172 = vmatprep.subr.mxu0 0.0
    %173 = vmatpush2.msra.mxu0 0.0
    %174 = vmatprep.subr.mxu0 0.0
    %175 = vmatpush2.msra.mxu0 0.0
    %176 = vmatprep.subr.mxu0 0.0
    %177 = vmatpush2.msra.mxu0 0.0
    %178 = vmatprep.subr.mxu0 0.0
    %179 = vmatpush2.msra.mxu0 0.0
    %180 = vmatprep.subr.mxu0 0.0
    %181 = vmatpush2.msra.mxu0 0.0
    %182 = vmatprep.subr.mxu0 0.0
    %183 = vmatpush2.msra.mxu0 0.0
    %184 = vmatprep.subr.mxu0 0.0
    %185 = vmatpush2.msra.mxu0 0.0
    %186 = vmatprep.subr.mxu0 0.0
    %187 = vmatpush2.msra.mxu0 0.0
    %188 = vmatprep.subr.mxu0 0.0
    %189 = vmatpush2.msra.mxu0 0.0
    %190 = vmatprep.subr.mxu0 0.0
    %191 = vmatpush2.msra.mxu0 0.0
    %192 = vmatprep.subr.mxu0 0.0
    %193 = vmatpush2.msra.mxu0 0.0
    %194 = vmatprep.subr.mxu0 0.0
    %195 = vmatpush2.msra.mxu0 0.0
    %196 = vmatprep.subr.mxu0 0.0
    %197 = vmatpush2.msra.mxu0 0.0
    %198 = vmatprep.subr.mxu0 0.0
    %199 = vmatpush2.msra.mxu0 0.0
    %200 = vmatprep.mubr.f32.mxu0 0.0
    %201 = vmatmul.mubr.f32.gmra.mxu0 %v124
    %v202 = vpop.f32.mrf.mxu0
    %v203 = vadd.f32 %v115, %v202
    %v204 = vpop.f32.mrf.mxu0
    %v205 = vadd.f32 %v119, %v204
    %206 = vmatprep.mubr.f32.mxu0 0.0
    %207 = vmatmul.mubr.f32.gmra.mxu0 %v127
    %v208 = vpop.f32.mrf.mxu0
    %v209 = vadd.f32 %v115, %v208
    %v210 = vpop.f32.mrf.mxu0
    %v211 = vadd.f32 %v119, %v210
    %212 = vdwg.mxu0
    %v213 = vmax.f32 %v203, 0.0
    %v214 = vmax.f32 %v205, 0.0
    %v215 = vmax.f32 %v209, 0.0
    %v216 = vmax.f32 %v211, 0.0
    %v217 = vld [vmem:[#allocation7] sm:$0xff]
    %v218 = vld [vmem:[#allocation7 + $0x8] sm:$0xff]
    %v219 = vld [vmem:[#allocation7 + $0x10] sm:$0xff]
    %v220 = vld [vmem:[#allocation7 + $0x18] sm:$0xff]
    %v221 = vld [vmem:[#allocation7 + $0x20] sm:$0xff]
    %v222 = vld [vmem:[#allocation7 + $0x28] sm:$0xff]
    %v223 = vld [vmem:[#allocation7 + $0x30] sm:$0xff]
    %v224 = vld [vmem:[#allocation7 + $0x38] sm:$0xff]
    %v225 = vld [vmem:[#allocation7 + $0x40] sm:$0xff]
    %v226 = vld [vmem:[#allocation7 + $0x48] sm:$0xff]
    %v227 = vld [vmem:[#allocation7 + $0x50] sm:$0xff]
    %v228 = vld [vmem:[#allocation7 + $0x58] sm:$0xff]
    %v229 = vld [vmem:[#allocation7 + $0x60] sm:$0xff]
    %v230 = vld [vmem:[#allocation7 + $0x68] sm:$0xff]
    %v231 = vld [vmem:[#allocation7 + $0x70] sm:$0xff]
    %v232 = vld [vmem:[#allocation7 + $0x78] sm:$0xff]
    %v233 = vld [vmem:[#allocation7 + $0x80] sm:$0xff]
    %v234 = vld [vmem:[#allocation7 + $0x88] sm:$0xff]
    %v235 = vld [vmem:[#allocation7 + $0x90] sm:$0xff]
    %v236 = vld [vmem:[#allocation7 + $0x98] sm:$0xff]
    %v237 = vld [vmem:[#allocation7 + $0xa0] sm:$0xff]
    %v238 = vld [vmem:[#allocation7 + $0xa8] sm:$0xff]
    %v239 = vld [vmem:[#allocation7 + $0xb0] sm:$0xff]
    %v240 = vld [vmem:[#allocation7 + $0xb8] sm:$0xff]
    %v241 = vld [vmem:[#allocation7 + $0xc0] sm:$0xff]
    %v242 = vld [vmem:[#allocation7 + $0xc8] sm:$0xff]
    %v243 = vld [vmem:[#allocation7 + $0xd0] sm:$0xff]
    %v244 = vld [vmem:[#allocation7 + $0xd8] sm:$0xff]
    %v245 = vld [vmem:[#allocation7 + $0xe0] sm:$0xff]
    %v246 = vld [vmem:[#allocation7 + $0xe8] sm:$0xff]
    %v247 = vld [vmem:[#allocation7 + $0xf0] sm:$0xff]
    %v248 = vld [vmem:[#allocation7 + $0xf8] sm:$0xff]
    %v249 = vld [vmem:[#allocation7 + $0x100] sm:$0xff]
    %v250 = vld [vmem:[#allocation7 + $0x108] sm:$0xff]
    %v251 = vld [vmem:[#allocation7 + $0x110] sm:$0xff]
    %v252 = vld [vmem:[#allocation7 + $0x118] sm:$0xff]
    %v253 = vld [vmem:[#allocation7 + $0x120] sm:$0xff]
    %v254 = vld [vmem:[#allocation7 + $0x128] sm:$0xff]
    %v255 = vld [vmem:[#allocation7 + $0x130] sm:$0xff]
    %v256 = vld [vmem:[#allocation7 + $0x138] sm:$0xff]
    %v257 = vld [vmem:[#allocation7 + $0x140] sm:$0xff]
    %v258 = vld [vmem:[#allocation7 + $0x148] sm:$0xff]
    %v259 = vld [vmem:[#allocation7 + $0x150] sm:$0xff]
    %v260 = vld [vmem:[#allocation7 + $0x158] sm:$0xff]
    %v261 = vld [vmem:[#allocation7 + $0x160] sm:$0xff]
    %v262 = vld [vmem:[#allocation7 + $0x168] sm:$0xff]
    %v263 = vld [vmem:[#allocation7 + $0x170] sm:$0xff]
    %v264 = vld [vmem:[#allocation7 + $0x178] sm:$0xff]
    %v265 = vld [vmem:[#allocation7 + $0x180] sm:$0xff]
    %v266 = vld [vmem:[#allocation7 + $0x188] sm:$0xff]
    %v267 = vld [vmem:[#allocation7 + $0x190] sm:$0xff]
    %v268 = vld [vmem:[#allocation7 + $0x198] sm:$0xff]
    %v269 = vld [vmem:[#allocation7 + $0x1a0] sm:$0xff]
    %v270 = vld [vmem:[#allocation7 + $0x1a8] sm:$0xff]
    %v271 = vld [vmem:[#allocation7 + $0x1b0] sm:$0xff]
    %v272 = vld [vmem:[#allocation7 + $0x1b8] sm:$0xff]
    %v273 = vld [vmem:[#allocation7 + $0x1c0] sm:$0xff]
    %v274 = vld [vmem:[#allocation7 + $0x1c8] sm:$0xff]
    %v275 = vld [vmem:[#allocation7 + $0x1d0] sm:$0xff]
    %v276 = vld [vmem:[#allocation7 + $0x1d8] sm:$0xff]
    %v277 = vld [vmem:[#allocation7 + $0x1e0] sm:$0xff]
    %v278 = vld [vmem:[#allocation7 + $0x1e8] sm:$0xff]
    %v279 = vld [vmem:[#allocation7 + $0x1f0] sm:$0xff]
    %v280 = vld [vmem:[#allocation7 + $0x1f8] sm:$0xff]
    %v281 = vld [vmem:[%s4] sm:$0x3]
    %v283 = vlaneseq
    %v284 = vshrl.u32 %v283, 7
    %v285 = vsub.s32 0, %v284
    %v286 = vrot.slane %v281, %v285
    %v287 = vlaneseq
    %v288 = vshrl.u32 %v287, 7
    %v289 = vsub.s32 1, %v288
    %v290 = vrot.slane %v281, %v289
    %293 = vmatprep.subr.mxu0 %v248
    %294 = vmatpush1.msra.mxu0 %v247
    %295 = vmatprep.subr.mxu0 %v246
    %296 = vmatpush1.msra.mxu0 %v245
    %297 = vmatprep.subr.mxu0 %v244
    %298 = vmatpush1.msra.mxu0 %v243
    %299 = vmatprep.subr.mxu0 %v242
    %300 = vmatpush1.msra.mxu0 %v241
    %301 = vmatprep.subr.mxu0 %v240
    %302 = vmatpush1.msra.mxu0 %v239
    %303 = vmatprep.subr.mxu0 %v238
    %304 = vmatpush1.msra.mxu0 %v237
    %305 = vmatprep.subr.mxu0 %v236
    %306 = vmatpush1.msra.mxu0 %v235
    %307 = vmatprep.subr.mxu0 %v234
    %308 = vmatpush1.msra.mxu0 %v233
    %309 = vmatprep.subr.mxu0 %v232
    %310 = vmatpush1.msra.mxu0 %v231
    %311 = vmatprep.subr.mxu0 %v230
    %312 = vmatpush1.msra.mxu0 %v229
    %313 = vmatprep.subr.mxu0 %v228
    %314 = vmatpush1.msra.mxu0 %v227
    %315 = vmatprep.subr.mxu0 %v226
    %316 = vmatpush1.msra.mxu0 %v225
    %317 = vmatprep.subr.mxu0 %v224
    %318 = vmatpush1.msra.mxu0 %v223
    %319 = vmatprep.subr.mxu0 %v222
    %320 = vmatpush1.msra.mxu0 %v221
    %321 = vmatprep.subr.mxu0 %v220
    %322 = vmatpush1.msra.mxu0 %v219
    %323 = vmatprep.subr.mxu0 %v218
    %324 = vmatpush1.msra.mxu0 %v217
    %325 = vmatprep.subr.mxu0 %v280
    %326 = vmatpush2.msra.mxu0 %v279
    %327 = vmatprep.subr.mxu0 %v278
    %328 = vmatpush2.msra.mxu0 %v277
    %329 = vmatprep.subr.mxu0 %v276
    %330 = vmatpush2.msra.mxu0 %v275
    %331 = vmatprep.subr.mxu0 %v274
    %332 = vmatpush2.msra.mxu0 %v273
    %333 = vmatprep.subr.mxu0 %v272
    %334 = vmatpush2.msra.mxu0 %v271
    %335 = vmatprep.subr.mxu0 %v270
    %336 = vmatpush2.msra.mxu0 %v269
    %337 = vmatprep.subr.mxu0 %v268
    %338 = vmatpush2.msra.mxu0 %v267
    %339 = vmatprep.subr.mxu0 %v266
    %340 = vmatpush2.msra.mxu0 %v265
    %341 = vmatprep.subr.mxu0 %v264
    %342 = vmatpush2.msra.mxu0 %v263
    %343 = vmatprep.subr.mxu0 %v262
    %344 = vmatpush2.msra.mxu0 %v261
    %345 = vmatprep.subr.mxu0 %v260
    %346 = vmatpush2.msra.mxu0 %v259
    %347 = vmatprep.subr.mxu0 %v258
    %348 = vmatpush2.msra.mxu0 %v257
    %349 = vmatprep.subr.mxu0 %v256
    %350 = vmatpush2.msra.mxu0 %v255
    %351 = vmatprep.subr.mxu0 %v254
    %352 = vmatpush2.msra.mxu0 %v253
    %353 = vmatprep.subr.mxu0 %v252
    %354 = vmatpush2.msra.mxu0 %v251
    %355 = vmatprep.subr.mxu0 %v250
    %356 = vmatpush2.msra.mxu0 %v249
    %357 = vmatprep.mubr.f32.mxu0 %v214
    %358 = vmatmul.mubr.f32.gmra.mxu0 %v213
    %v359 = vpop.f32.mrf.mxu0
    %v360 = vadd.f32 %v286, %v359
    %v361 = vpop.f32.mrf.mxu0
    %v362 = vadd.f32 %v290, %v361
    %363 = vmatprep.mubr.f32.mxu0 %v216
    %364 = vmatmul.mubr.f32.gmra.mxu0 %v215
    %v365 = vpop.f32.mrf.mxu0
    %v366 = vadd.f32 %v286, %v365
    %v367 = vpop.f32.mrf.mxu0
    %v368 = vadd.f32 %v290, %v367
    %369 = vdwg.mxu0
    %v370 = vmax.f32 %v360, 0.0
    %v371 = vmax.f32 %v362, 0.0
    %v372 = vmax.f32 %v366, 0.0
    %v373 = vmax.f32 %v368, 0.0
    %v374 = vld [vmem:[#allocation8] sm:$0xff]
    %v375 = vld [vmem:[#allocation8 + $0x8] sm:$0xff]
    %v376 = vld [vmem:[#allocation8 + $0x10] sm:$0xff]
    %v377 = vld [vmem:[#allocation8 + $0x18] sm:$0xff]
    %v378 = vld [vmem:[#allocation8 + $0x20] sm:$0xff]
    %v379 = vld [vmem:[#allocation8 + $0x28] sm:$0xff]
    %v380 = vld [vmem:[#allocation8 + $0x30] sm:$0xff]
    %v381 = vld [vmem:[#allocation8 + $0x38] sm:$0xff]
    %v382 = vld [vmem:[#allocation8 + $0x40] sm:$0xff]
    %v383 = vld [vmem:[#allocation8 + $0x48] sm:$0xff]
    %v384 = vld [vmem:[#allocation8 + $0x50] sm:$0xff]
    %v385 = vld [vmem:[#allocation8 + $0x58] sm:$0xff]
    %v386 = vld [vmem:[#allocation8 + $0x60] sm:$0xff]
    %v387 = vld [vmem:[#allocation8 + $0x68] sm:$0xff]
    %v388 = vld [vmem:[#allocation8 + $0x70] sm:$0xff]
    %v389 = vld [vmem:[#allocation8 + $0x78] sm:$0xff]
    %v390 = vld [vmem:[#allocation8 + $0x80] sm:$0xff]
    %v391 = vld [vmem:[#allocation8 + $0x88] sm:$0xff]
    %v392 = vld [vmem:[#allocation8 + $0x90] sm:$0xff]
    %v393 = vld [vmem:[#allocation8 + $0x98] sm:$0xff]
    %v394 = vld [vmem:[#allocation8 + $0xa0] sm:$0xff]
    %v395 = vld [vmem:[#allocation8 + $0xa8] sm:$0xff]
    %v396 = vld [vmem:[#allocation8 + $0xb0] sm:$0xff]
    %v397 = vld [vmem:[#allocation8 + $0xb8] sm:$0xff]
    %v398 = vld [vmem:[#allocation8 + $0xc0] sm:$0xff]
    %v399 = vld [vmem:[#allocation8 + $0xc8] sm:$0xff]
    %v400 = vld [vmem:[#allocation8 + $0xd0] sm:$0xff]
    %v401 = vld [vmem:[#allocation8 + $0xd8] sm:$0xff]
    %v402 = vld [vmem:[#allocation8 + $0xe0] sm:$0xff]
    %v403 = vld [vmem:[#allocation8 + $0xe8] sm:$0xff]
    %v404 = vld [vmem:[#allocation8 + $0xf0] sm:$0xff]
    %v405 = vld [vmem:[#allocation8 + $0xf8] sm:$0xff]
    %v406 = vld [vmem:[%s6] sm:$0x1]
    %v408 = vlaneseq
    %v409 = vshrl.u32 %v408, 7
    %v410 = vsub.s32 0, %v409
    %v411 = vrot.slane %v406, %v410
    %413 = vmatprep.subr.mxu0 0.0
    %414 = vmatpush1.msra.mxu0 %v389
    %415 = vmatprep.subr.mxu0 0.0
    %416 = vmatpush1.msra.mxu0 %v388
    %417 = vmatprep.subr.mxu0 0.0
    %418 = vmatpush1.msra.mxu0 %v387
    %419 = vmatprep.subr.mxu0 0.0
    %420 = vmatpush1.msra.mxu0 %v386
    %421 = vmatprep.subr.mxu0 0.0
    %422 = vmatpush1.msra.mxu0 %v385
    %423 = vmatprep.subr.mxu0 0.0
    %424 = vmatpush1.msra.mxu0 %v384
    %425 = vmatprep.subr.mxu0 0.0
    %426 = vmatpush1.msra.mxu0 %v383
    %427 = vmatprep.subr.mxu0 0.0
    %428 = vmatpush1.msra.mxu0 %v382
    %429 = vmatprep.subr.mxu0 0.0
    %430 = vmatpush1.msra.mxu0 %v381
    %431 = vmatprep.subr.mxu0 0.0
    %432 = vmatpush1.msra.mxu0 %v380
    %433 = vmatprep.subr.mxu0 0.0
    %434 = vmatpush1.msra.mxu0 %v379
    %435 = vmatprep.subr.mxu0 0.0
    %436 = vmatpush1.msra.mxu0 %v378
    %437 = vmatprep.subr.mxu0 0.0
    %438 = vmatpush1.msra.mxu0 %v377
    %439 = vmatprep.subr.mxu0 0.0
    %440 = vmatpush1.msra.mxu0 %v376
    %441 = vmatprep.subr.mxu0 0.0
    %442 = vmatpush1.msra.mxu0 %v375
    %443 = vmatprep.subr.mxu0 0.0
    %444 = vmatpush1.msra.mxu0 %v374
    %445 = vmatprep.subr.mxu0 0.0
    %446 = vmatpush2.msra.mxu0 %v405
    %447 = vmatprep.subr.mxu0 0.0
    %448 = vmatpush2.msra.mxu0 %v404
    %449 = vmatprep.subr.mxu0 0.0
    %450 = vmatpush2.msra.mxu0 %v403
    %451 = vmatprep.subr.mxu0 0.0
    %452 = vmatpush2.msra.mxu0 %v402
    %453 = vmatprep.subr.mxu0 0.0
    %454 = vmatpush2.msra.mxu0 %v401
    %455 = vmatprep.subr.mxu0 0.0
    %456 = vmatpush2.msra.mxu0 %v400
    %457 = vmatprep.subr.mxu0 0.0
    %458 = vmatpush2.msra.mxu0 %v399
    %459 = vmatprep.subr.mxu0 0.0
    %460 = vmatpush2.msra.mxu0 %v398
    %461 = vmatprep.subr.mxu0 0.0
    %462 = vmatpush2.msra.mxu0 %v397
    %463 = vmatprep.subr.mxu0 0.0
    %464 = vmatpush2.msra.mxu0 %v396
    %465 = vmatprep.subr.mxu0 0.0
    %466 = vmatpush2.msra.mxu0 %v395
    %467 = vmatprep.subr.mxu0 0.0
    %468 = vmatpush2.msra.mxu0 %v394
    %469 = vmatprep.subr.mxu0 0.0
    %470 = vmatpush2.msra.mxu0 %v393
    %471 = vmatprep.subr.mxu0 0.0
    %472 = vmatpush2.msra.mxu0 %v392
    %473 = vmatprep.subr.mxu0 0.0
    %474 = vmatpush2.msra.mxu0 %v391
    %475 = vmatprep.subr.mxu0 0.0
    %476 = vmatpush2.msra.mxu0 %v390
    %477 = vmatprep.mubr.f32.mxu0 %v371
    %478 = vmatmul.mubr.f32.gmra.mxu0 %v370
    %v479 = vpop.f32.mrf.mxu0
    %v480 = vadd.f32 %v411, %v479
    %v481 = vpop.f32.mrf.mxu0
    %482 = vmatprep.mubr.f32.mxu0 %v373
    %483 = vmatmul.mubr.f32.gmra.mxu0 %v372
    %v484 = vpop.f32.mrf.mxu0
    %v485 = vadd.f32 %v411, %v484
    %v486 = vpop.f32.mrf.mxu0
    %487 = vdwg.mxu0
    %v488 = vtanh.pop %v480
    %v489 = vtanh.pop %v485
    %490 = vst [vmem:[#allocation10] sm:$0xff] %v488
    %491 = vst [vmem:[#allocation10 + $0x8] sm:$0xff] %v489
    // Predicated region
    $region46: #{generator_forward.1} parent=1 // pred_check
      _
    $region47: #{generator_forward.1} parent=1 // pred_check_branch
      %493 = sbr.rel (0) target = $region49
    $region48: #{generator_forward.1} parent=1 // pred_region
      %s495 = ssub.s32 256, 256
      %496 = vsyncadd [#allocation4], %s495
      %s497 = sshll.u32 [#allocation10], 4
      %s498 = int_to_ptr.vmem [resolvable:$true] %s497
      %503 = dma.vmem_to_hbm [thread:$0]  %s498, 256, %s7, [#allocation4], 128, 128, 8
    $region49: #{generator_forward.1} parent=1 // pred_fallthru
      _
    // Predicated region
    $region50: #{generator_forward.1} parent=1 // pred_check
      _
    $region51: #{generator_forward.1} parent=1 // pred_check_branch
      %505 = sbr.rel (0) target = $region53
    $region52: #{generator_forward.1} parent=1 // pred_region
      %506 = dma.done [#allocation4], 256
    $region53: #{generator_forward.1} parent=1 // pred_fallthru
      _
    %507 = vsyncpa [#allocation3], 1
    %508 = vsyncpa [#allocation6], 1
    %509 = vsyncpa [#allocation9], 1
    %510 = vsyncpa [#allocation4], 1

</llo_original>
